<compile_context>
chip_gen: v7x
topology: tpu7x:2x2x1
jax: 0.10.0
libtpu: 0.0.40
codegen_flags: <defaults>
</compile_context>

<pallas_src>
import jax
import jax.numpy as jnp
from jax.experimental import pallas as pl
from jax.experimental.pallas import tpu as pltpu

LANE = 128


# ---------------------------------------------------------------------------
# Kernel: 5-layer highway MLP, transposed layout (features x rows)
# ---------------------------------------------------------------------------
def _proto_mlp_kernel(rc_ref, rq_ref, w1, b1, w2, b2, w3, b3, w4, b4, w5, b5,
                      out_ref):
    rc = rc_ref[...]                                                   # (H, tn)
    rq = rq_ref[...]                                                   # (H, tn)
    # combined_rep^T built in VMEM: sublane concat of four (H, tn) blocks.
    x = jnp.concatenate([rc, rq, rc * rq, rc - rq], axis=0)            # (4H, tn)
    o1 = jnp.tanh(jnp.dot(w1[...], x, preferred_element_type=jnp.float32)
                  + b1[...]) + x                                       # (4H, tn)
    o2 = jnp.tanh(jnp.dot(w2[...], o1, preferred_element_type=jnp.float32)
                  + b2[...]) + o1                                      # (4H, tn)
    o3 = jnp.tanh(jnp.dot(w3[...], o2, preferred_element_type=jnp.float32)
                  + b3[...])                                           # (2H, tn)
    o4 = jnp.tanh(jnp.dot(w4[...], o3, preferred_element_type=jnp.float32)
                  + b4[...])                                           # (H, tn)
    # HiddenLayer_5 (H -> 1) as a sublane reduction -> lane-dense (1, tn) row.
    logit = jnp.sum(o4 * w5[...], axis=0, keepdims=True) + b5[...]     # (1, tn)
    out_ref[...] = jax.nn.sigmoid(logit)


# ---------------------------------------------------------------------------
# Wrapper
# ---------------------------------------------------------------------------
def prototype_net_forward(params, rep_classes, rep_query, *, tn=LANE):
    (w1, b1, w2, b2, w3, b3, w4, b4, w5, b5, wp, bp, wpw, bpw) = params

    C, H = rep_classes.shape
    B = rep_query.shape[0]
    N = B * C
    assert tn % LANE == 0

    # Column n of the transposed activations corresponds to row n = b*C + c of
    # the PyTorch combined_rep (repeat / repeat_interleave ordering).
    rc_t = jnp.tile(rep_classes.T.astype(jnp.float32), (1, B))         # (H, N)
    rq_t = jnp.repeat(rep_query.T.astype(jnp.float32), C, axis=1)      # (H, N)

    n_tiles = pl.cdiv(N, tn)
    n_pad = n_tiles * tn
    if n_pad != N:                                   # pad lanes up to the tile
        rc_t = jnp.pad(rc_t, ((0, 0), (0, n_pad - N)))
        rq_t = jnp.pad(rq_t, ((0, 0), (0, n_pad - N)))

    def full(arr):
        return pl.BlockSpec(arr.shape, lambda i: (0,) * arr.ndim)

    scores = pl.pallas_call(
        _proto_mlp_kernel,
        out_shape=jax.ShapeDtypeStruct((1, n_pad), jnp.float32),
        grid=(n_tiles,),
        in_specs=[
            pl.BlockSpec((H, tn), lambda i: (0, i)),
            pl.BlockSpec((H, tn), lambda i: (0, i)),
            full(w1), full(b1), full(w2), full(b2),
            full(w3), full(b3), full(w4), full(b4),
            full(w5), full(b5),
        ],
        out_specs=pl.BlockSpec((1, tn), lambda i: (0, i)),
        compiler_params=pltpu.CompilerParams(dimension_semantics=("parallel",)),
    )(rc_t, rq_t, w1, b1, w2, b2, w3, b3, w4, b4, w5, b5)

    # Fold + score projections: ~100 FLOPs on (B, 6) — plain JAX, XLA fuses it
    # (removes the second pallas_call launch + HBM round trip).
    fold = scores[0, :N].reshape(B, C)
    src = jax.nn.sigmoid(fold[:, :3] @ wp + bp)
    tgt = jax.nn.sigmoid(fold[:, 3:] @ wp + bp)
    w = jax.nn.sigmoid(fold @ wpw + bpw)
    return w * src + (1.0 - w) * tgt


# ---------------------------------------------------------------------------
# Deterministic parameter init (shapes from PrototypeNet.__init__)
# ---------------------------------------------------------------------------
def init_params(key, hidden_size):
    H = hidden_size

    def dense_oi(k, fan_in, fan_out):          # PyTorch (out, in) + column bias
        kw, kb = jax.random.split(k)
        w = jax.random.normal(kw, (fan_out, fan_in), jnp.float32) * 0.1
        b = jax.random.normal(kb, (fan_out, 1), jnp.float32) * 0.1
        return w, b

    def dense_io(k, fan_in, fan_out):          # (in, out) for wrapper-side x @ W
        kw, kb = jax.random.split(k)
        w = jax.random.normal(kw, (fan_in, fan_out), jnp.float32) * 0.1
        b = jax.random.normal(kb, (fan_out,), jnp.float32) * 0.1
        return w, b

    k = jax.random.split(key, 7)
    w1, b1 = dense_oi(k[0], 4 * H, 4 * H)      # HiddenLayer_1
    w2, b2 = dense_oi(k[1], 4 * H, 4 * H)      # HiddenLayer_2
    w3, b3 = dense_oi(k[2], 4 * H, 2 * H)      # HiddenLayer_3
    w4, b4 = dense_oi(k[3], 2 * H, H)          # HiddenLayer_4
    w5r, b5 = dense_oi(k[4], H, 1)             # HiddenLayer_5: w5r (1, H), b5 (1, 1)
    w5 = w5r.T                                 # stored as (H, 1) column for the reduction
    wp, bp = dense_io(k[5], 3, 3)              # score_proj
    wpw, bpw = dense_io(k[6], 6, 3)            # score_proj_weight
    return (w1, b1, w2, b2, w3, b3, w4, b4, w5, b5, wp, bp, wpw, bpw)


# ---------------------------------------------------------------------------
# Pure-JAX reference (eval-mode dropout == identity)
# ---------------------------------------------------------------------------
def reference(params, rep_classes, rep_query):
    (w1, b1, w2, b2, w3, b3, w4, b4, w5, b5, wp, bp, wpw, bpw) = params
    C, _ = rep_classes.shape
    B = rep_query.shape[0]
    rc = jnp.tile(rep_classes, (B, 1))
    rq = jnp.repeat(rep_query, C, axis=0)
    x = jnp.concatenate([rc, rq, rc * rq, rc - rq], axis=1)
    o1 = jnp.tanh(x @ w1.T + b1.T) + x
    o2 = jnp.tanh(o1 @ w2.T + b2.T) + o1
    o3 = jnp.tanh(o2 @ w3.T + b3.T)
    o4 = jnp.tanh(o3 @ w4.T + b4.T)
    s = jax.nn.sigmoid(o4 @ w5 + b5)           # w5 (H, 1), b5 (1, 1)
    fold = s.reshape(B, C)
    src = jax.nn.sigmoid(fold[:, :3] @ wp + bp)
    tgt = jax.nn.sigmoid(fold[:, -3:] @ wp + bp)
    w = jax.nn.sigmoid(fold @ wpw + bpw)
    return w * src + (1.0 - w) * tgt


if __name__ == "__main__":
    hidden_size = 32       # 4*H = 128 -> one lane-width feature axis
    class_size = 6         # 3 MNLI + 3 target classes
    batch_size = 4         # N = batch*class = 24 rows -> one lane tile

    key = jax.random.PRNGKey(0)
    kp, kc, kq = jax.random.split(key, 3)
    params = init_params(kp, hidden_size)
    rep_classes = jax.random.normal(kc, (class_size, hidden_size), jnp.float32)
    rep_query_batch = jax.random.normal(kq, (batch_size, hidden_size), jnp.float32)

    fwd = jax.jit(prototype_net_forward)
    out = jax.block_until_ready(fwd(params, rep_classes, rep_query_batch))

    ref = reference(params, rep_classes, rep_query_batch)
    assert out.shape == (batch_size, 3), out.shape
    assert jnp.allclose(out, ref, atol=1e-5, rtol=1e-5), "mismatch vs JAX reference"

    print("KERNEL_OK")
</pallas_src>

<mosaic_0001>
module attributes {stable_mosaic.version = 11 : i64} {
  func.func @_proto_mlp_kernel(%arg0: i32, %arg1: memref<32x128xf32, #tpu.memory_space<vmem>>, %arg2: memref<32x128xf32, #tpu.memory_space<vmem>>, %arg3: memref<128x128xf32, #tpu.memory_space<vmem>>, %arg4: memref<128x1xf32, #tpu.memory_space<vmem>>, %arg5: memref<128x128xf32, #tpu.memory_space<vmem>>, %arg6: memref<128x1xf32, #tpu.memory_space<vmem>>, %arg7: memref<64x128xf32, #tpu.memory_space<vmem>>, %arg8: memref<64x1xf32, #tpu.memory_space<vmem>>, %arg9: memref<32x64xf32, #tpu.memory_space<vmem>>, %arg10: memref<32x1xf32, #tpu.memory_space<vmem>>, %arg11: memref<32x1xf32, #tpu.memory_space<vmem>>, %arg12: memref<1x1xf32, #tpu.memory_space<vmem>>, %arg13: memref<1x128xf32, #tpu.memory_space<vmem>>) attributes {dimension_semantics = [#tpu.dimension_semantics<parallel>], iteration_bounds = array<i64: 1>, scalar_prefetch = 0 : i64, scratch_operands = 0 : i64, tpu.core_type = #tpu.core_type<tc>, window_params = [{transform_indices = @transform_0, window_bounds = array<i64: 32, 128>}, {transform_indices = @transform_1, window_bounds = array<i64: 32, 128>}, {pipeline_mode = #tpu.pipeline_mode<synchronous>, transform_indices = @transform_2, window_bounds = array<i64: 128, 128>}, {pipeline_mode = #tpu.pipeline_mode<synchronous>, transform_indices = @transform_3, window_bounds = array<i64: 128, 1>}, {pipeline_mode = #tpu.pipeline_mode<synchronous>, transform_indices = @transform_4, window_bounds = array<i64: 128, 128>}, {pipeline_mode = #tpu.pipeline_mode<synchronous>, transform_indices = @transform_5, window_bounds = array<i64: 128, 1>}, {pipeline_mode = #tpu.pipeline_mode<synchronous>, transform_indices = @transform_6, window_bounds = array<i64: 64, 128>}, {pipeline_mode = #tpu.pipeline_mode<synchronous>, transform_indices = @transform_7, window_bounds = array<i64: 64, 1>}, {pipeline_mode = #tpu.pipeline_mode<synchronous>, transform_indices = @transform_8, window_bounds = array<i64: 32, 64>}, {pipeline_mode = #tpu.pipeline_mode<synchronous>, transform_indices = @transform_9, window_bounds = array<i64: 32, 1>}, {pipeline_mode = #tpu.pipeline_mode<synchronous>, transform_indices = @transform_10, window_bounds = array<i64: 32, 1>}, {pipeline_mode = #tpu.pipeline_mode<synchronous>, transform_indices = @transform_11, window_bounds = array<i64: 1, 1>}, {transform_indices = @transform_12, window_bounds = array<i64: 1, 128>}]} {
    %c0 = arith.constant 0 : index
    %c0_0 = arith.constant 0 : index
    %0 = vector.load %arg1[%c0, %c0_0] : memref<32x128xf32, #tpu.memory_space<vmem>>, vector<32x128xf32>
    %c0_1 = arith.constant 0 : index
    %c0_2 = arith.constant 0 : index
    %1 = vector.load %arg2[%c0_1, %c0_2] : memref<32x128xf32, #tpu.memory_space<vmem>>, vector<32x128xf32>
    %2 = arith.mulf %0, %1 : vector<32x128xf32>
    %3 = arith.subf %0, %1 : vector<32x128xf32>
    %4 = tpu.concatenate %0, %1, %2, %3 in 0 : vector<32x128xf32>, vector<32x128xf32>, vector<32x128xf32>, vector<32x128xf32> -> vector<128x128xf32>
    %c0_3 = arith.constant 0 : index
    %c0_4 = arith.constant 0 : index
    %5 = vector.load %arg3[%c0_3, %c0_4] : memref<128x128xf32, #tpu.memory_space<vmem>>, vector<128x128xf32>
    %cst = arith.constant dense<0.000000e+00> : vector<128x128xf32>
    %6 = tpu.matmul %5, %4, %cst {dimension_numbers = #tpu.dot_dimension_numbers<[1], [0], [0], [1], [0, 0, 1, 1], [], []>} : vector<128x128xf32>, vector<128x128xf32>, vector<128x128xf32> -> vector<128x128xf32>
    %c0_5 = arith.constant 0 : index
    %c0_6 = arith.constant 0 : index
    %7 = vector.load %arg4[%c0_5, %c0_6] : memref<128x1xf32, #tpu.memory_space<vmem>>, vector<128x1xf32>
    %8 = vector.broadcast %7 : vector<128x1xf32> to vector<128x128xf32>
    %9 = arith.addf %6, %8 : vector<128x128xf32>
    %10 = math.tanh %9 : vector<128x128xf32>
    %11 = arith.addf %10, %4 : vector<128x128xf32>
    %c0_7 = arith.constant 0 : index
    %c0_8 = arith.constant 0 : index
    %12 = vector.load %arg5[%c0_7, %c0_8] : memref<128x128xf32, #tpu.memory_space<vmem>>, vector<128x128xf32>
    %cst_9 = arith.constant dense<0.000000e+00> : vector<128x128xf32>
    %13 = tpu.matmul %12, %11, %cst_9 {dimension_numbers = #tpu.dot_dimension_numbers<[1], [0], [0], [1], [0, 0, 1, 1], [], []>} : vector<128x128xf32>, vector<128x128xf32>, vector<128x128xf32> -> vector<128x128xf32>
    %c0_10 = arith.constant 0 : index
    %c0_11 = arith.constant 0 : index
    %14 = vector.load %arg6[%c0_10, %c0_11] : memref<128x1xf32, #tpu.memory_space<vmem>>, vector<128x1xf32>
    %15 = vector.broadcast %14 : vector<128x1xf32> to vector<128x128xf32>
    %16 = arith.addf %13, %15 : vector<128x128xf32>
    %17 = math.tanh %16 : vector<128x128xf32>
    %18 = arith.addf %17, %11 : vector<128x128xf32>
    %c0_12 = arith.constant 0 : index
    %c0_13 = arith.constant 0 : index
    %19 = vector.load %arg7[%c0_12, %c0_13] : memref<64x128xf32, #tpu.memory_space<vmem>>, vector<64x128xf32>
    %cst_14 = arith.constant dense<0.000000e+00> : vector<64x128xf32>
    %20 = tpu.matmul %19, %18, %cst_14 {dimension_numbers = #tpu.dot_dimension_numbers<[1], [0], [0], [1], [0, 0, 1, 1], [], []>} : vector<64x128xf32>, vector<128x128xf32>, vector<64x128xf32> -> vector<64x128xf32>
    %c0_15 = arith.constant 0 : index
    %c0_16 = arith.constant 0 : index
    %21 = vector.load %arg8[%c0_15, %c0_16] : memref<64x1xf32, #tpu.memory_space<vmem>>, vector<64x1xf32>
    %22 = vector.broadcast %21 : vector<64x1xf32> to vector<64x128xf32>
    %23 = arith.addf %20, %22 : vector<64x128xf32>
    %24 = math.tanh %23 : vector<64x128xf32>
    %c0_17 = arith.constant 0 : index
    %c0_18 = arith.constant 0 : index
    %25 = vector.load %arg9[%c0_17, %c0_18] : memref<32x64xf32, #tpu.memory_space<vmem>>, vector<32x64xf32>
    %cst_19 = arith.constant dense<0.000000e+00> : vector<32x128xf32>
    %26 = tpu.matmul %25, %24, %cst_19 {dimension_numbers = #tpu.dot_dimension_numbers<[1], [0], [0], [1], [0, 0, 1, 1], [], []>} : vector<32x64xf32>, vector<64x128xf32>, vector<32x128xf32> -> vector<32x128xf32>
    %c0_20 = arith.constant 0 : index
    %c0_21 = arith.constant 0 : index
    %27 = vector.load %arg10[%c0_20, %c0_21] : memref<32x1xf32, #tpu.memory_space<vmem>>, vector<32x1xf32>
    %28 = vector.broadcast %27 : vector<32x1xf32> to vector<32x128xf32>
    %29 = arith.addf %26, %28 : vector<32x128xf32>
    %30 = math.tanh %29 : vector<32x128xf32>
    %c0_22 = arith.constant 0 : index
    %c0_23 = arith.constant 0 : index
    %31 = vector.load %arg11[%c0_22, %c0_23] : memref<32x1xf32, #tpu.memory_space<vmem>>, vector<32x1xf32>
    %32 = vector.broadcast %31 : vector<32x1xf32> to vector<32x128xf32>
    %33 = arith.mulf %30, %32 : vector<32x128xf32>
    %cst_24 = arith.constant dense<0.000000e+00> : vector<128xf32>
    %34 = vector.multi_reduction <add>, %33, %cst_24 [0] : vector<32x128xf32> to vector<128xf32>
    %35 = vector.shape_cast %34 : vector<128xf32> to vector<1x128xf32>
    %c0_25 = arith.constant 0 : index
    %c0_26 = arith.constant 0 : index
    %36 = vector.load %arg12[%c0_25, %c0_26] : memref<1x1xf32, #tpu.memory_space<vmem>>, vector<1x1xf32>
    %37 = vector.broadcast %36 : vector<1x1xf32> to vector<1x128xf32>
    %38 = arith.addf %35, %37 : vector<1x128xf32>
    %39 = arith.negf %38 : vector<1x128xf32>
    %40 = math.exp %39 : vector<1x128xf32>
    %cst_27 = arith.constant 1.000000e+00 : f32
    %41 = vector.broadcast %cst_27 : f32 to vector<1x128xf32>
    %42 = arith.addf %41, %40 : vector<1x128xf32>
    %43 = arith.divf %41, %42 : vector<1x128xf32>
    %c0_28 = arith.constant 0 : index
    %c0_29 = arith.constant 0 : index
    %44 = vector.load %arg13[%c0_28, %c0_29] : memref<1x128xf32, #tpu.memory_space<vmem>>, vector<1x128xf32>
    tpu.vector_store %arg13[%c0_28, %c0_29], %43 {strides = array<i32>} : memref<1x128xf32, #tpu.memory_space<vmem>>, vector<1x128xf32>,
    return
  }
  func.func @transform_0(%arg0: i32) -> (i32, i32) {
    %c0_i32 = arith.constant 0 : i32
    %c0_i32_0 = arith.constant 0 : i32
    return %c0_i32, %arg0 : i32, i32
  }
  func.func @transform_1(%arg0: i32) -> (i32, i32) {
    %c0_i32 = arith.constant 0 : i32
    %c0_i32_0 = arith.constant 0 : i32
    return %c0_i32, %arg0 : i32, i32
  }
  func.func @transform_2(%arg0: i32) -> (i32, i32) {
    %c0_i32 = arith.constant 0 : i32
    %c0_i32_0 = arith.constant 0 : i32
    %c0_i32_1 = arith.constant 0 : i32
    return %c0_i32, %c0_i32_0 : i32, i32
  }
  func.func @transform_3(%arg0: i32) -> (i32, i32) {
    %c0_i32 = arith.constant 0 : i32
    %c0_i32_0 = arith.constant 0 : i32
    %c0_i32_1 = arith.constant 0 : i32
    return %c0_i32, %c0_i32_0 : i32, i32
  }
  func.func @transform_4(%arg0: i32) -> (i32, i32) {
    %c0_i32 = arith.constant 0 : i32
    %c0_i32_0 = arith.constant 0 : i32
    %c0_i32_1 = arith.constant 0 : i32
    return %c0_i32, %c0_i32_0 : i32, i32
  }
  func.func @transform_5(%arg0: i32) -> (i32, i32) {
    %c0_i32 = arith.constant 0 : i32
    %c0_i32_0 = arith.constant 0 : i32
    %c0_i32_1 = arith.constant 0 : i32
    return %c0_i32, %c0_i32_0 : i32, i32
  }
  func.func @transform_6(%arg0: i32) -> (i32, i32) {
    %c0_i32 = arith.constant 0 : i32
    %c0_i32_0 = arith.constant 0 : i32
    %c0_i32_1 = arith.constant 0 : i32
    return %c0_i32, %c0_i32_0 : i32, i32
  }
  func.func @transform_7(%arg0: i32) -> (i32, i32) {
    %c0_i32 = arith.constant 0 : i32
    %c0_i32_0 = arith.constant 0 : i32
    %c0_i32_1 = arith.constant 0 : i32
    return %c0_i32, %c0_i32_0 : i32, i32
  }
  func.func @transform_8(%arg0: i32) -> (i32, i32) {
    %c0_i32 = arith.constant 0 : i32
    %c0_i32_0 = arith.constant 0 : i32
    %c0_i32_1 = arith.constant 0 : i32
    return %c0_i32, %c0_i32_0 : i32, i32
  }
  func.func @transform_9(%arg0: i32) -> (i32, i32) {
    %c0_i32 = arith.constant 0 : i32
    %c0_i32_0 = arith.constant 0 : i32
    %c0_i32_1 = arith.constant 0 : i32
    return %c0_i32, %c0_i32_0 : i32, i32
  }
  func.func @transform_10(%arg0: i32) -> (i32, i32) {
    %c0_i32 = arith.constant 0 : i32
    %c0_i32_0 = arith.constant 0 : i32
    %c0_i32_1 = arith.constant 0 : i32
    return %c0_i32, %c0_i32_0 : i32, i32
  }
  func.func @transform_11(%arg0: i32) -> (i32, i32) {
    %c0_i32 = arith.constant 0 : i32
    %c0_i32_0 = arith.constant 0 : i32
    %c0_i32_1 = arith.constant 0 : i32
    return %c0_i32, %c0_i32_0 : i32, i32
  }
  func.func @transform_12(%arg0: i32) -> (i32, i32) {
    %c0_i32 = arith.constant 0 : i32
    %c0_i32_0 = arith.constant 0 : i32
    return %c0_i32, %arg0 : i32, i32
  }
}

</mosaic_0001>

<llo_original>
// kernel: tile.9
$region0: #{tile.9}
  %s0 = inlined_call_operand.vmem [shape: f32[32,4,6], index: 0, kind: input, shape index: {}]
  %s1 = inlined_call_operand.vmem [shape: f32[32,24], index: 1, kind: output, shape index: {}]
  %v2 = vld [vmem:[%s0] sm:$0x3f]
  %vm3 = vcmask 261120
  %4 = vst.msk [vmem:[%s1] sm:$0x3f] %vm3, %v2
  %s5 = scalar_lea.vmem %s0, 8
  %v6 = vld [vmem:[%s5] sm:$0x3f]
  %vm7 = vcmask 261120
  %s8 = scalar_lea.vmem %s1, 6
  %9 = vst.msk [vmem:[%s8] sm:$0x3f] %vm7, %v6
  %s10 = scalar_lea.vmem %s0, 16
  %v11 = vld [vmem:[%s10] sm:$0x3f]
  %vm12 = vcmask 261120
  %s13 = scalar_lea.vmem %s1, 12
  %14 = vst.msk [vmem:[%s13] sm:$0x3f] %vm12, %v11
  %s15 = scalar_lea.vmem %s0, 24
  %v16 = vld [vmem:[%s15] sm:$0x3f]
  %vm17 = vcmask 261120
  %s18 = scalar_lea.vmem %s1, 18
  %19 = vst.msk [vmem:[%s18] sm:$0x3f] %vm17, %v16

// kernel: squeeze.1
$region0: #{squeeze.1}
  %s0 = inlined_call_operand.vmem [shape: bf16[24], index: 0, kind: input, shape index: {}]
  %s1 = inlined_call_operand.vmem [shape: bf16[4,6], index: 1, kind: output, shape index: {}]
  $region1: #{squeeze.1} parent=0
    #allocation0 [shape = 'u8[4096]{0}', space=vmem, size = 0x1000, scoped, tag = 'scoped mem for output reshape']
    #allocation1 [shape = 'u8[4096]{0}', space=vmem, size = 0x1000, scoped, tag = 'scoped mem for input reshape']
    %s3 = smul.u32 1, 2
    %s4 = sshllo.u32 0, %s3
    %s5 = sshrl.u32 %s4, 1
    %s6 = sor.u32 %s4, %s5
    %s7 = sand.u32 %s6, 85
    %s8 = sshrl.u32 %s7, 1
    %s9 = sor.u32 %s7, %s8
    %s10 = sand.u32 51, %s9
    %s11 = sshrl.u32 %s10, 2
    %s12 = sor.u32 %s10, %s11
    %s13 = sand.u32 15, %s12
    %v14 = vld [vmem:[%s0] sm:%s13]
    %v15 = vunpack.c.l.bf16 %v14
    %v16 = vunpack.c.h.bf16 %v14
    %17 = vst [vmem:[#allocation1] sm:%s4] %v15
    %v18 = vld [vmem:[#allocation1] sm:$0x1]
    %vm19 = vcmask 48128
    %20 = vst.msk [vmem:[#allocation0] sm:$0x1] %vm19, %v18
    %v21 = vld [vmem:[#allocation1] sm:$0x1]
    %22 = vrot.lane.b32.xlu0 %v21, 122
    %v23 = vpop.permute.xlu0 %22
    %vm24 = vcmask 48128
    %s25 = scalar_lea.vmem [#allocation0], 1
    %26 = vst.msk [vmem:[%s25] sm:$0x1] %vm24, %v23
    %v27 = vld [vmem:[#allocation1] sm:$0x1]
    %28 = vrot.lane.b32.xlu0 %v27, 116
    %v29 = vpop.permute.xlu0 %28
    %vm30 = vcmask 48128
    %s31 = scalar_lea.vmem [#allocation0], 2
    %32 = vst.msk [vmem:[%s31] sm:$0x1] %vm30, %v29
    %v33 = vld [vmem:[#allocation1] sm:$0x1]
    %34 = vrot.lane.b32.xlu0 %v33, 110
    %v35 = vpop.permute.xlu0 %34
    %vm36 = vcmask 48128
    %s37 = scalar_lea.vmem [#allocation0], 3
    %38 = vst.msk [vmem:[%s37] sm:$0x1] %vm36, %v35
    %s40 = smul.u32 2, 2
    %s41 = sshllo.u32 0, %s40
    %s42 = sshrl.u32 %s40, 1
    %v43 = vld [vmem:[#allocation0] sm:%s41]
    %v44 = vpack.c.bf16 0.0, %v43
    %s45 = sshllo.u32 0, %s42
    %46 = vst [vmem:[%s1] sm:%s45] %v44

// kernel: prototype_net_forward.1
$region0: #{prototype_net_forward.1}
  #allocation0 [shape = 'u32[]', space=smem, size = 0x4, offset = 0x4, fixed_abs, tag = 'smem constant byte address 0x4 - core index']
  #allocation1 [shape = 'u32[144,128]{1,0:T(1,128)}', space=vmem, size = 0x12000, scoped, tag = 'internal scratch']
  #allocation2 [shape = 'f32[1,1]{1,0:T(1,128)S(1)}', space=vmem, size = 0x200, scoped, tag = 'scoped memory for prototype_net_forward.1']
  %s0 = inlined_call_operand.vmem [shape: f32[32,128], index: 0, kind: input, shape index: {}]
  %s1 = inlined_call_operand.vmem [shape: f32[32,128], index: 1, kind: input, shape index: {}]
  %s2 = inlined_call_operand.vmem [shape: f32[128,128], index: 2, kind: input, shape index: {}]
  %s3 = inlined_call_operand.vmem [shape: f32[128,1], index: 3, kind: input, shape index: {}]
  %s4 = inlined_call_operand.vmem [shape: f32[128,128], index: 4, kind: input, shape index: {}]
  %s5 = inlined_call_operand.vmem [shape: f32[128,1], index: 5, kind: input, shape index: {}]
  %s6 = inlined_call_operand.vmem [shape: f32[64,128], index: 6, kind: input, shape index: {}]
  %s7 = inlined_call_operand.vmem [shape: f32[64,1], index: 7, kind: input, shape index: {}]
  %s8 = inlined_call_operand.vmem [shape: f32[32,64], index: 8, kind: input, shape index: {}]
  %s9 = inlined_call_operand.vmem [shape: f32[32,1], index: 9, kind: input, shape index: {}]
  %s10 = inlined_call_operand.vmem [shape: f32[32,1], index: 10, kind: input, shape index: {}]
  %s11 = inlined_call_operand.<no memory space> [shape: f32[1,1], index: 11, kind: input, shape index: {}]
  %s12 = inlined_call_operand.vmem [shape: f32[1,128], index: 12, kind: output, shape index: {}]
  %s13 = sld [smem:[#allocation0]]
  $region58: #{prototype_net_forward.1} parent=0
    _
  %s15 = ssub.s32 1, %s13
  %s16 = scalar_select 0, %s15, %s13
  %v17 = vstv %s11
  %18 = vst [vmem:[#allocation2] sm:$0x1] %v17
  // Predicated region
  $region2: #{prototype_net_forward.1} parent=0 // pred_check
    _
  $region3: #{prototype_net_forward.1} parent=0 // pred_check_branch
    %20 = sbr.rel (0) target = $region5
  $region4: #{prototype_net_forward.1} parent=0 // pred_region
    _
  $region5: #{prototype_net_forward.1} parent=0 // pred_fallthru
    _
  // Predicated region
  $region6: #{prototype_net_forward.1} parent=0 // pred_check
    _
  $region7: #{prototype_net_forward.1} parent=0 // pred_check_branch
    %22 = sbr.rel (0) target = $region9
  $region8: #{prototype_net_forward.1} parent=0 // pred_region
    _
  $region9: #{prototype_net_forward.1} parent=0 // pred_fallthru
    _
  // Predicated region
  $region10: #{prototype_net_forward.1} parent=0 // pred_check
    _
  $region11: #{prototype_net_forward.1} parent=0 // pred_check_branch
    %24 = sbr.rel (0) target = $region13
  $region12: #{prototype_net_forward.1} parent=0 // pred_region
    _
  $region13: #{prototype_net_forward.1} parent=0 // pred_fallthru
    _
  // Predicated region
  $region14: #{prototype_net_forward.1} parent=0 // pred_check
    _
  $region15: #{prototype_net_forward.1} parent=0 // pred_check_branch
    %26 = sbr.rel (0) target = $region17
  $region16: #{prototype_net_forward.1} parent=0 // pred_region
    _
  $region17: #{prototype_net_forward.1} parent=0 // pred_fallthru
    _
  // Predicated region
  $region18: #{prototype_net_forward.1} parent=0 // pred_check
    _
  $region19: #{prototype_net_forward.1} parent=0 // pred_check_branch
    %28 = sbr.rel (0) target = $region21
  $region20: #{prototype_net_forward.1} parent=0 // pred_region
    _
  $region21: #{prototype_net_forward.1} parent=0 // pred_fallthru
    _
  // Predicated region
  $region22: #{prototype_net_forward.1} parent=0 // pred_check
    _
  $region23: #{prototype_net_forward.1} parent=0 // pred_check_branch
    %30 = sbr.rel (0) target = $region25
  $region24: #{prototype_net_forward.1} parent=0 // pred_region
    _
  $region25: #{prototype_net_forward.1} parent=0 // pred_fallthru
    _
  // Predicated region
  $region26: #{prototype_net_forward.1} parent=0 // pred_check
    _
  $region27: #{prototype_net_forward.1} parent=0 // pred_check_branch
    %32 = sbr.rel (0) target = $region29
  $region28: #{prototype_net_forward.1} parent=0 // pred_region
    _
  $region29: #{prototype_net_forward.1} parent=0 // pred_fallthru
    _
  // Predicated region
  $region30: #{prototype_net_forward.1} parent=0 // pred_check
    _
  $region31: #{prototype_net_forward.1} parent=0 // pred_check_branch
    %34 = sbr.rel (0) target = $region33
  $region32: #{prototype_net_forward.1} parent=0 // pred_region
    _
  $region33: #{prototype_net_forward.1} parent=0 // pred_fallthru
    _
  // Predicated region
  $region34: #{prototype_net_forward.1} parent=0 // pred_check
    _
  $region35: #{prototype_net_forward.1} parent=0 // pred_check_branch
    %36 = sbr.rel (0) target = $region37
  $region36: #{prototype_net_forward.1} parent=0 // pred_region
    _
  $region37: #{prototype_net_forward.1} parent=0 // pred_fallthru
    _
  // Predicated region
  $region38: #{prototype_net_forward.1} parent=0 // pred_check
    _
  $region39: #{prototype_net_forward.1} parent=0 // pred_check_branch
    %38 = sbr.rel (0) target = $region41
  $region40: #{prototype_net_forward.1} parent=0 // pred_region
    _
  $region41: #{prototype_net_forward.1} parent=0 // pred_fallthru
    _
  // Predicated region
  $region42: #{prototype_net_forward.1} parent=0 // pred_check
    _
  $region43: #{prototype_net_forward.1} parent=0 // pred_check_branch
    %40 = sbr.rel (0) target = $region45
  $region44: #{prototype_net_forward.1} parent=0 // pred_region
    _
  $region45: #{prototype_net_forward.1} parent=0 // pred_fallthru
    _
  // Predicated region
  $region46: #{prototype_net_forward.1} parent=0 // pred_check
    _
  $region47: #{prototype_net_forward.1} parent=0 // pred_check_branch
    %42 = sbr.rel (0) target = $region49
  $region48: #{prototype_net_forward.1} parent=0 // pred_region
    _
  $region49: #{prototype_net_forward.1} parent=0 // pred_fallthru
    _
  %v43 = vld [vmem:[%s0] sm:$0xff]
  %v44 = vld [vmem:[%s0 + $0x8] sm:$0xff]
  %v45 = vld [vmem:[%s0 + $0x10] sm:$0xff]
  %v46 = vld [vmem:[%s0 + $0x18] sm:$0xff]
  %v47 = vld [vmem:[%s1] sm:$0xff]
  %v48 = vld [vmem:[%s1 + $0x8] sm:$0xff]
  %v49 = vld [vmem:[%s1 + $0x10] sm:$0xff]
  %v50 = vld [vmem:[%s1 + $0x18] sm:$0xff]
  %v51 = vmul.f32 %v43, %v47
  %v52 = vmul.f32 %v44, %v48
  %v53 = vmul.f32 %v45, %v49
  %v54 = vmul.f32 %v46, %v50
  %v55 = vsub.f32 %v43, %v47
  %v56 = vsub.f32 %v44, %v48
  %v57 = vsub.f32 %v45, %v49
  %v58 = vsub.f32 %v46, %v50
  %v59 = vld [vmem:[%s2] sm:$0xff]
  %v60 = vld [vmem:[%s2 + $0x8] sm:$0xff]
  %v61 = vld [vmem:[%s2 + $0x10] sm:$0xff]
  %v62 = vld [vmem:[%s2 + $0x18] sm:$0xff]
  %v63 = vld [vmem:[%s2 + $0x20] sm:$0xff]
  %v64 = vld [vmem:[%s2 + $0x28] sm:$0xff]
  %v65 = vld [vmem:[%s2 + $0x30] sm:$0xff]
  %v66 = vld [vmem:[%s2 + $0x38] sm:$0xff]
  %v67 = vld [vmem:[%s2 + $0x40] sm:$0xff]
  %v68 = vld [vmem:[%s2 + $0x48] sm:$0xff]
  %v69 = vld [vmem:[%s2 + $0x50] sm:$0xff]
  %v70 = vld [vmem:[%s2 + $0x58] sm:$0xff]
  %v71 = vld [vmem:[%s2 + $0x60] sm:$0xff]
  %v72 = vld [vmem:[%s2 + $0x68] sm:$0xff]
  %v73 = vld [vmem:[%s2 + $0x70] sm:$0xff]
  %v74 = vld [vmem:[%s2 + $0x78] sm:$0xff]
  %v75 = vld [vmem:[%s3] sm:$0xff]
  %v76 = vld [vmem:[%s3 + $0x8] sm:$0xff]
  %v77 = vld [vmem:[%s3 + $0x10] sm:$0xff]
  %v78 = vld [vmem:[%s3 + $0x18] sm:$0xff]
  %v79 = vld [vmem:[%s3 + $0x20] sm:$0xff]
  %v80 = vld [vmem:[%s3 + $0x28] sm:$0xff]
  %v81 = vld [vmem:[%s3 + $0x30] sm:$0xff]
  %v82 = vld [vmem:[%s3 + $0x38] sm:$0xff]
  %v83 = vld [vmem:[%s3 + $0x40] sm:$0xff]
  %v84 = vld [vmem:[%s3 + $0x48] sm:$0xff]
  %v85 = vld [vmem:[%s3 + $0x50] sm:$0xff]
  %v86 = vld [vmem:[%s3 + $0x58] sm:$0xff]
  %v87 = vld [vmem:[%s3 + $0x60] sm:$0xff]
  %v88 = vld [vmem:[%s3 + $0x68] sm:$0xff]
  %v89 = vld [vmem:[%s3 + $0x70] sm:$0xff]
  %v90 = vld [vmem:[%s3 + $0x78] sm:$0xff]
  %92 = vset.pattern.permute.xlu0 0
  %93 = vperm.xlu0 %92, %v75
  %v94 = vpop.permute.xlu0 %93
  %97 = vset.pattern.permute.xlu0 0
  %98 = vperm.xlu0 %97, %v76
  %v99 = vpop.permute.xlu0 %98
  %102 = vset.pattern.permute.xlu0 0
  %103 = vperm.xlu0 %102, %v77
  %v104 = vpop.permute.xlu0 %103
  %107 = vset.pattern.permute.xlu0 0
  %108 = vperm.xlu0 %107, %v78
  %v109 = vpop.permute.xlu0 %108
  %112 = vset.pattern.permute.xlu0 0
  %113 = vperm.xlu0 %112, %v79
  %v114 = vpop.permute.xlu0 %113
  %117 = vset.pattern.permute.xlu0 0
  %118 = vperm.xlu0 %117, %v80
  %v119 = vpop.permute.xlu0 %118
  %122 = vset.pattern.permute.xlu0 0
  %123 = vperm.xlu0 %122, %v81
  %v124 = vpop.permute.xlu0 %123
  %127 = vset.pattern.permute.xlu0 0
  %128 = vperm.xlu0 %127, %v82
  %v129 = vpop.permute.xlu0 %128
  %132 = vset.pattern.permute.xlu0 0
  %133 = vperm.xlu0 %132, %v83
  %v134 = vpop.permute.xlu0 %133
  %137 = vset.pattern.permute.xlu0 0
  %138 = vperm.xlu0 %137, %v84
  %v139 = vpop.permute.xlu0 %138
  %142 = vset.pattern.permute.xlu0 0
  %143 = vperm.xlu0 %142, %v85
  %v144 = vpop.permute.xlu0 %143
  %147 = vset.pattern.permute.xlu0 0
  %148 = vperm.xlu0 %147, %v86
  %v149 = vpop.permute.xlu0 %148
  %152 = vset.pattern.permute.xlu0 0
  %153 = vperm.xlu0 %152, %v87
  %v154 = vpop.permute.xlu0 %153
  %157 = vset.pattern.permute.xlu0 0
  %158 = vperm.xlu0 %157, %v88
  %v159 = vpop.permute.xlu0 %158
  %162 = vset.pattern.permute.xlu0 0
  %163 = vperm.xlu0 %162, %v89
  %v164 = vpop.permute.xlu0 %163
  %167 = vset.pattern.permute.xlu0 0
  %168 = vperm.xlu0 %167, %v90
  %v169 = vpop.permute.xlu0 %168
  %171 = vmatprep.subr.mxu0 0.0
  %172 = vmatpush1.msra.mxu0 %v43
  %173 = vmatprep.subr.mxu0 0.0
  %174 = vmatpush1.msra.mxu0 %v44
  %175 = vmatprep.subr.mxu0 0.0
  %176 = vmatpush1.msra.mxu0 %v45
  %177 = vmatprep.subr.mxu0 0.0
  %178 = vmatpush1.msra.mxu0 %v46
  %179 = vmatprep.subr.mxu0 0.0
  %180 = vmatpush1.msra.mxu0 %v47
  %181 = vmatprep.subr.mxu0 0.0
  %182 = vmatpush1.msra.mxu0 %v48
  %183 = vmatprep.subr.mxu0 0.0
  %184 = vmatpush1.msra.mxu0 %v49
  %185 = vmatprep.subr.mxu0 0.0
  %186 = vmatpush1.msra.mxu0 %v50
  %187 = vmatprep.subr.mxu0 0.0
  %188 = vmatpush1.msra.mxu0 %v51
  %189 = vmatprep.subr.mxu0 0.0
  %190 = vmatpush1.msra.mxu0 %v52
  %191 = vmatprep.subr.mxu0 0.0
  %192 = vmatpush1.msra.mxu0 %v53
  %193 = vmatprep.subr.mxu0 0.0
  %194 = vmatpush1.msra.mxu0 %v54
  %195 = vmatprep.subr.mxu0 0.0
  %196 = vmatpush1.msra.mxu0 %v55
  %197 = vmatprep.subr.mxu0 0.0
  %198 = vmatpush1.msra.mxu0 %v56
  %199 = vmatprep.subr.mxu0 0.0
  %200 = vmatpush1.msra.mxu0 %v57
  %201 = vmatprep.subr.mxu0 0.0
  %202 = vmatpush1.msra.mxu0 %v58
  %203 = vmatprep.subr.mxu0 0.0
  %204 = vmatpush1.msra.mxu0 0.0
  %205 = vmatprep.subr.mxu0 0.0
  %206 = vmatpush1.msra.mxu0 0.0
  %207 = vmatprep.subr.mxu0 0.0
  %208 = vmatpush1.msra.mxu0 0.0
  %209 = vmatprep.subr.mxu0 0.0
  %210 = vmatpush1.msra.mxu0 0.0
  %211 = vmatprep.subr.mxu0 0.0
  %212 = vmatpush1.msra.mxu0 0.0
  %213 = vmatprep.subr.mxu0 0.0
  %214 = vmatpush1.msra.mxu0 0.0
  %215 = vmatprep.subr.mxu0 0.0
  %216 = vmatpush1.msra.mxu0 0.0
  %217 = vmatprep.subr.mxu0 0.0
  %218 = vmatpush1.msra.mxu0 0.0
  %219 = vmatprep.subr.mxu0 0.0
  %220 = vmatpush1.msra.mxu0 0.0
  %221 = vmatprep.subr.mxu0 0.0
  %222 = vmatpush1.msra.mxu0 0.0
  %223 = vmatprep.subr.mxu0 0.0
  %224 = vmatpush1.msra.mxu0 0.0
  %225 = vmatprep.subr.mxu0 0.0
  %226 = vmatpush1.msra.mxu0 0.0
  %227 = vmatprep.subr.mxu0 0.0
  %228 = vmatpush1.msra.mxu0 0.0
  %229 = vmatprep.subr.mxu0 0.0
  %230 = vmatpush1.msra.mxu0 0.0
  %231 = vmatprep.subr.mxu0 0.0
  %232 = vmatpush1.msra.mxu0 0.0
  %233 = vmatprep.subr.mxu0 0.0
  %234 = vmatpush1.msra.mxu0 0.0
  %235 = vmatprep.mubr.f32.mxu0 0.0
  %236 = vmatmul.mubr.f32.gmra.mrb[0].mxu0 %v59
  %v237 = vpop.f32.mrb[0].mxu0
  %v238 = vadd.f32 %v94, %v237
  %v239 = vpop.f32.mrb[0].mxu0
  %240 = vmatprep.mubr.f32.mxu0 0.0
  %241 = vmatmul.mubr.f32.gmra.mrb[0].mxu0 %v60
  %v242 = vpop.f32.mrb[0].mxu0
  %v243 = vadd.f32 %v99, %v242
  %v244 = vpop.f32.mrb[0].mxu0
  %245 = vmatprep.mubr.f32.mxu0 0.0
  %246 = vmatmul.mubr.f32.gmra.mrb[0].mxu0 %v61
  %v247 = vpop.f32.mrb[0].mxu0
  %v248 = vadd.f32 %v104, %v247
  %v249 = vpop.f32.mrb[0].mxu0
  %250 = vmatprep.mubr.f32.mxu0 0.0
  %251 = vmatmul.mubr.f32.gmra.mrb[0].mxu0 %v62
  %v252 = vpop.f32.mrb[0].mxu0
  %v253 = vadd.f32 %v109, %v252
  %v254 = vpop.f32.mrb[0].mxu0
  %255 = vmatprep.mubr.f32.mxu0 0.0
  %256 = vmatmul.mubr.f32.gmra.mrb[0].mxu0 %v63
  %v257 = vpop.f32.mrb[0].mxu0
  %v258 = vadd.f32 %v114, %v257
  %v259 = vpop.f32.mrb[0].mxu0
  %260 = vmatprep.mubr.f32.mxu0 0.0
  %261 = vmatmul.mubr.f32.gmra.mrb[0].mxu0 %v64
  %v262 = vpop.f32.mrb[0].mxu0
  %v263 = vadd.f32 %v119, %v262
  %v264 = vpop.f32.mrb[0].mxu0
  %265 = vmatprep.mubr.f32.mxu0 0.0
  %266 = vmatmul.mubr.f32.gmra.mrb[0].mxu0 %v65
  %v267 = vpop.f32.mrb[0].mxu0
  %v268 = vadd.f32 %v124, %v267
  %v269 = vpop.f32.mrb[0].mxu0
  %270 = vmatprep.mubr.f32.mxu0 0.0
  %271 = vmatmul.mubr.f32.gmra.mrb[0].mxu0 %v66
  %v272 = vpop.f32.mrb[0].mxu0
  %v273 = vadd.f32 %v129, %v272
  %v274 = vpop.f32.mrb[0].mxu0
  %275 = vmatprep.mubr.f32.mxu0 0.0
  %276 = vmatmul.mubr.f32.gmra.mrb[0].mxu0 %v67
  %v277 = vpop.f32.mrb[0].mxu0
  %v278 = vadd.f32 %v134, %v277
  %v279 = vpop.f32.mrb[0].mxu0
  %280 = vmatprep.mubr.f32.mxu0 0.0
  %281 = vmatmul.mubr.f32.gmra.mrb[0].mxu0 %v68
  %v282 = vpop.f32.mrb[0].mxu0
  %v283 = vadd.f32 %v139, %v282
  %v284 = vpop.f32.mrb[0].mxu0
  %285 = vmatprep.mubr.f32.mxu0 0.0
  %286 = vmatmul.mubr.f32.gmra.mrb[0].mxu0 %v69
  %v287 = vpop.f32.mrb[0].mxu0
  %v288 = vadd.f32 %v144, %v287
  %v289 = vpop.f32.mrb[0].mxu0
  %290 = vmatprep.mubr.f32.mxu0 0.0
  %291 = vmatmul.mubr.f32.gmra.mrb[0].mxu0 %v70
  %v292 = vpop.f32.mrb[0].mxu0
  %v293 = vadd.f32 %v149, %v292
  %v294 = vpop.f32.mrb[0].mxu0
  %295 = vmatprep.mubr.f32.mxu0 0.0
  %296 = vmatmul.mubr.f32.gmra.mrb[0].mxu0 %v71
  %v297 = vpop.f32.mrb[0].mxu0
  %v298 = vadd.f32 %v154, %v297
  %v299 = vpop.f32.mrb[0].mxu0
  %300 = vmatprep.mubr.f32.mxu0 0.0
  %301 = vmatmul.mubr.f32.gmra.mrb[0].mxu0 %v72
  %v302 = vpop.f32.mrb[0].mxu0
  %v303 = vadd.f32 %v159, %v302
  %v304 = vpop.f32.mrb[0].mxu0
  %305 = vmatprep.mubr.f32.mxu0 0.0
  %306 = vmatmul.mubr.f32.gmra.mrb[0].mxu0 %v73
  %v307 = vpop.f32.mrb[0].mxu0
  %v308 = vadd.f32 %v164, %v307
  %v309 = vpop.f32.mrb[0].mxu0
  %310 = vmatprep.mubr.f32.mxu0 0.0
  %311 = vmatmul.mubr.f32.gmra.mrb[0].mxu0 %v74
  %v312 = vpop.f32.mrb[0].mxu0
  %v313 = vadd.f32 %v169, %v312
  %v314 = vpop.f32.mrb[0].mxu0
  %315 = vdwg.mxu0
  %v316 = vtanh.pop %v238
  %v317 = vtanh.pop %v243
  %v318 = vtanh.pop %v248
  %v319 = vtanh.pop %v253
  %v320 = vtanh.pop %v258
  %v321 = vtanh.pop %v263
  %v322 = vtanh.pop %v268
  %v323 = vtanh.pop %v273
  %v324 = vtanh.pop %v278
  %v325 = vtanh.pop %v283
  %v326 = vtanh.pop %v288
  %v327 = vtanh.pop %v293
  %v328 = vtanh.pop %v298
  %v329 = vtanh.pop %v303
  %v330 = vtanh.pop %v308
  %v331 = vtanh.pop %v313
  %v332 = vadd.f32 %v316, %v43
  %v333 = vadd.f32 %v317, %v44
  %v334 = vadd.f32 %v318, %v45
  %v335 = vadd.f32 %v319, %v46
  %v336 = vadd.f32 %v320, %v47
  %v337 = vadd.f32 %v321, %v48
  %v338 = vadd.f32 %v322, %v49
  %v339 = vadd.f32 %v323, %v50
  %v340 = vadd.f32 %v324, %v51
  %v341 = vadd.f32 %v325, %v52
  %v342 = vadd.f32 %v326, %v53
  %v343 = vadd.f32 %v327, %v54
  %v344 = vadd.f32 %v328, %v55
  %v345 = vadd.f32 %v329, %v56
  %v346 = vadd.f32 %v330, %v57
  %v347 = vadd.f32 %v331, %v58
  %v348 = vld [vmem:[%s4] sm:$0xff]
  %v349 = vld [vmem:[%s4 + $0x8] sm:$0xff]
  %v350 = vld [vmem:[%s4 + $0x10] sm:$0xff]
  %v351 = vld [vmem:[%s4 + $0x18] sm:$0xff]
  %v352 = vld [vmem:[%s4 + $0x20] sm:$0xff]
  %v353 = vld [vmem:[%s4 + $0x28] sm:$0xff]
  %v354 = vld [vmem:[%s4 + $0x30] sm:$0xff]
  %v355 = vld [vmem:[%s4 + $0x38] sm:$0xff]
  %v356 = vld [vmem:[%s4 + $0x40] sm:$0xff]
  %v357 = vld [vmem:[%s4 + $0x48] sm:$0xff]
  %v358 = vld [vmem:[%s4 + $0x50] sm:$0xff]
  %v359 = vld [vmem:[%s4 + $0x58] sm:$0xff]
  %v360 = vld [vmem:[%s4 + $0x60] sm:$0xff]
  %v361 = vld [vmem:[%s4 + $0x68] sm:$0xff]
  %v362 = vld [vmem:[%s4 + $0x70] sm:$0xff]
  %v363 = vld [vmem:[%s4 + $0x78] sm:$0xff]
  %v364 = vld [vmem:[%s5] sm:$0xff]
  %v365 = vld [vmem:[%s5 + $0x8] sm:$0xff]
  %v366 = vld [vmem:[%s5 + $0x10] sm:$0xff]
  %v367 = vld [vmem:[%s5 + $0x18] sm:$0xff]
  %v368 = vld [vmem:[%s5 + $0x20] sm:$0xff]
  %v369 = vld [vmem:[%s5 + $0x28] sm:$0xff]
  %v370 = vld [vmem:[%s5 + $0x30] sm:$0xff]
  %v371 = vld [vmem:[%s5 + $0x38] sm:$0xff]
  %v372 = vld [vmem:[%s5 + $0x40] sm:$0xff]
  %v373 = vld [vmem:[%s5 + $0x48] sm:$0xff]
  %v374 = vld [vmem:[%s5 + $0x50] sm:$0xff]
  %v375 = vld [vmem:[%s5 + $0x58] sm:$0xff]
  %v376 = vld [vmem:[%s5 + $0x60] sm:$0xff]
  %v377 = vld [vmem:[%s5 + $0x68] sm:$0xff]
  %v378 = vld [vmem:[%s5 + $0x70] sm:$0xff]
  %v379 = vld [vmem:[%s5 + $0x78] sm:$0xff]
  %381 = vset.pattern.permute.xlu0 0
  %382 = vperm.xlu0 %381, %v364
  %v383 = vpop.permute.xlu0 %382
  %386 = vset.pattern.permute.xlu0 0
  %387 = vperm.xlu0 %386, %v365
  %v388 = vpop.permute.xlu0 %387
  %391 = vset.pattern.permute.xlu0 0
  %392 = vperm.xlu0 %391, %v366
  %v393 = vpop.permute.xlu0 %392
  %396 = vset.pattern.permute.xlu0 0
  %397 = vperm.xlu0 %396, %v367
  %v398 = vpop.permute.xlu0 %397
  %401 = vset.pattern.permute.xlu0 0
  %402 = vperm.xlu0 %401, %v368
  %v403 = vpop.permute.xlu0 %402
  %406 = vset.pattern.permute.xlu0 0
  %407 = vperm.xlu0 %406, %v369
  %v408 = vpop.permute.xlu0 %407
  %411 = vset.pattern.permute.xlu0 0
  %412 = vperm.xlu0 %411, %v370
  %v413 = vpop.permute.xlu0 %412
  %416 = vset.pattern.permute.xlu0 0
  %417 = vperm.xlu0 %416, %v371
  %v418 = vpop.permute.xlu0 %417
  %421 = vset.pattern.permute.xlu0 0
  %422 = vperm.xlu0 %421, %v372
  %v423 = vpop.permute.xlu0 %422
  %426 = vset.pattern.permute.xlu0 0
  %427 = vperm.xlu0 %426, %v373
  %v428 = vpop.permute.xlu0 %427
  %431 = vset.pattern.permute.xlu0 0
  %432 = vperm.xlu0 %431, %v374
  %v433 = vpop.permute.xlu0 %432
  %436 = vset.pattern.permute.xlu0 0
  %437 = vperm.xlu0 %436, %v375
  %v438 = vpop.permute.xlu0 %437
  %441 = vset.pattern.permute.xlu0 0
  %442 = vperm.xlu0 %441, %v376
  %v443 = vpop.permute.xlu0 %442
  %446 = vset.pattern.permute.xlu0 0
  %447 = vperm.xlu0 %446, %v377
  %v448 = vpop.permute.xlu0 %447
  %451 = vset.pattern.permute.xlu0 0
  %452 = vperm.xlu0 %451, %v378
  %v453 = vpop.permute.xlu0 %452
  %456 = vset.pattern.permute.xlu0 0
  %457 = vperm.xlu0 %456, %v379
  %v458 = vpop.permute.xlu0 %457
  %460 = vmatprep.subr.mxu0 0.0
  %461 = vmatpush1.msra.mxu0 %v332
  %462 = vmatprep.subr.mxu0 0.0
  %463 = vmatpush1.msra.mxu0 %v333
  %464 = vmatprep.subr.mxu0 0.0
  %465 = vmatpush1.msra.mxu0 %v334
  %466 = vmatprep.subr.mxu0 0.0
  %467 = vmatpush1.msra.mxu0 %v335
  %468 = vmatprep.subr.mxu0 0.0
  %469 = vmatpush1.msra.mxu0 %v336
  %470 = vmatprep.subr.mxu0 0.0
  %471 = vmatpush1.msra.mxu0 %v337
  %472 = vmatprep.subr.mxu0 0.0
  %473 = vmatpush1.msra.mxu0 %v338
  %474 = vmatprep.subr.mxu0 0.0
  %475 = vmatpush1.msra.mxu0 %v339
  %476 = vmatprep.subr.mxu0 0.0
  %477 = vmatpush1.msra.mxu0 %v340
  %478 = vmatprep.subr.mxu0 0.0
  %479 = vmatpush1.msra.mxu0 %v341
  %480 = vmatprep.subr.mxu0 0.0
  %481 = vmatpush1.msra.mxu0 %v342
  %482 = vmatprep.subr.mxu0 0.0
  %483 = vmatpush1.msra.mxu0 %v343
  %484 = vmatprep.subr.mxu0 0.0
  %485 = vmatpush1.msra.mxu0 %v344
  %486 = vmatprep.subr.mxu0 0.0
  %487 = vmatpush1.msra.mxu0 %v345
  %488 = vmatprep.subr.mxu0 0.0
  %489 = vmatpush1.msra.mxu0 %v346
  %490 = vmatprep.subr.mxu0 0.0
  %491 = vmatpush1.msra.mxu0 %v347
  %492 = vmatprep.subr.mxu0 0.0
  %493 = vmatpush1.msra.mxu0 0.0
  %494 = vmatprep.subr.mxu0 0.0
  %495 = vmatpush1.msra.mxu0 0.0
  %496 = vmatprep.subr.mxu0 0.0
  %497 = vmatpush1.msra.mxu0 0.0
  %498 = vmatprep.subr.mxu0 0.0
  %499 = vmatpush1.msra.mxu0 0.0
  %500 = vmatprep.subr.mxu0 0.0
  %501 = vmatpush1.msra.mxu0 0.0
  %502 = vmatprep.subr.mxu0 0.0
  %503 = vmatpush1.msra.mxu0 0.0
  %504 = vmatprep.subr.mxu0 0.0
  %505 = vmatpush1.msra.mxu0 0.0
  %506 = vmatprep.subr.mxu0 0.0
  %507 = vmatpush1.msra.mxu0 0.0
  %508 = vmatprep.subr.mxu0 0.0
  %509 = vmatpush1.msra.mxu0 0.0
  %510 = vmatprep.subr.mxu0 0.0
  %511 = vmatpush1.msra.mxu0 0.0
  %512 = vmatprep.subr.mxu0 0.0
  %513 = vmatpush1.msra.mxu0 0.0
  %514 = vmatprep.subr.mxu0 0.0
  %515 = vmatpush1.msra.mxu0 0.0
  %516 = vmatprep.subr.mxu0 0.0
  %517 = vmatpush1.msra.mxu0 0.0
  %518 = vmatprep.subr.mxu0 0.0
  %519 = vmatpush1.msra.mxu0 0.0
  %520 = vmatprep.subr.mxu0 0.0
  %521 = vmatpush1.msra.mxu0 0.0
  %522 = vmatprep.subr.mxu0 0.0
  %523 = vmatpush1.msra.mxu0 0.0
  %524 = vmatprep.mubr.f32.mxu0 0.0
  %525 = vmatmul.mubr.f32.gmra.mrb[0].mxu0 %v348
  %v526 = vpop.f32.mrb[0].mxu0
  %v527 = vadd.f32 %v383, %v526
  %v528 = vpop.f32.mrb[0].mxu0
  %529 = vmatprep.mubr.f32.mxu0 0.0
  %530 = vmatmul.mubr.f32.gmra.mrb[0].mxu0 %v349
  %v531 = vpop.f32.mrb[0].mxu0
  %v532 = vadd.f32 %v388, %v531
  %v533 = vpop.f32.mrb[0].mxu0
  %534 = vmatprep.mubr.f32.mxu0 0.0
  %535 = vmatmul.mubr.f32.gmra.mrb[0].mxu0 %v350
  %v536 = vpop.f32.mrb[0].mxu0
  %v537 = vadd.f32 %v393, %v536
  %v538 = vpop.f32.mrb[0].mxu0
  %539 = vmatprep.mubr.f32.mxu0 0.0
  %540 = vmatmul.mubr.f32.gmra.mrb[0].mxu0 %v351
  %v541 = vpop.f32.mrb[0].mxu0
  %v542 = vadd.f32 %v398, %v541
  %v543 = vpop.f32.mrb[0].mxu0
  %544 = vmatprep.mubr.f32.mxu0 0.0
  %545 = vmatmul.mubr.f32.gmra.mrb[0].mxu0 %v352
  %v546 = vpop.f32.mrb[0].mxu0
  %v547 = vadd.f32 %v403, %v546
  %v548 = vpop.f32.mrb[0].mxu0
  %549 = vmatprep.mubr.f32.mxu0 0.0
  %550 = vmatmul.mubr.f32.gmra.mrb[0].mxu0 %v353
  %v551 = vpop.f32.mrb[0].mxu0
  %v552 = vadd.f32 %v408, %v551
  %v553 = vpop.f32.mrb[0].mxu0
  %554 = vmatprep.mubr.f32.mxu0 0.0
  %555 = vmatmul.mubr.f32.gmra.mrb[0].mxu0 %v354
  %v556 = vpop.f32.mrb[0].mxu0
  %v557 = vadd.f32 %v413, %v556
  %v558 = vpop.f32.mrb[0].mxu0
  %559 = vmatprep.mubr.f32.mxu0 0.0
  %560 = vmatmul.mubr.f32.gmra.mrb[0].mxu0 %v355
  %v561 = vpop.f32.mrb[0].mxu0
  %v562 = vadd.f32 %v418, %v561
  %v563 = vpop.f32.mrb[0].mxu0
  %564 = vmatprep.mubr.f32.mxu0 0.0
  %565 = vmatmul.mubr.f32.gmra.mrb[0].mxu0 %v356
  %v566 = vpop.f32.mrb[0].mxu0
  %v567 = vadd.f32 %v423, %v566
  %v568 = vpop.f32.mrb[0].mxu0
  %569 = vmatprep.mubr.f32.mxu0 0.0
  %570 = vmatmul.mubr.f32.gmra.mrb[0].mxu0 %v357
  %v571 = vpop.f32.mrb[0].mxu0
  %v572 = vadd.f32 %v428, %v571
  %v573 = vpop.f32.mrb[0].mxu0
  %574 = vmatprep.mubr.f32.mxu0 0.0
  %575 = vmatmul.mubr.f32.gmra.mrb[0].mxu0 %v358
  %v576 = vpop.f32.mrb[0].mxu0
  %v577 = vadd.f32 %v433, %v576
  %v578 = vpop.f32.mrb[0].mxu0
  %579 = vmatprep.mubr.f32.mxu0 0.0
  %580 = vmatmul.mubr.f32.gmra.mrb[0].mxu0 %v359
  %v581 = vpop.f32.mrb[0].mxu0
  %v582 = vadd.f32 %v438, %v581
  %v583 = vpop.f32.mrb[0].mxu0
  %584 = vmatprep.mubr.f32.mxu0 0.0
  %585 = vmatmul.mubr.f32.gmra.mrb[0].mxu0 %v360
  %v586 = vpop.f32.mrb[0].mxu0
  %v587 = vadd.f32 %v443, %v586
  %v588 = vpop.f32.mrb[0].mxu0
  %589 = vmatprep.mubr.f32.mxu0 0.0
  %590 = vmatmul.mubr.f32.gmra.mrb[0].mxu0 %v361
  %v591 = vpop.f32.mrb[0].mxu0
  %v592 = vadd.f32 %v448, %v591
  %v593 = vpop.f32.mrb[0].mxu0
  %594 = vmatprep.mubr.f32.mxu0 0.0
  %595 = vmatmul.mubr.f32.gmra.mrb[0].mxu0 %v362
  %v596 = vpop.f32.mrb[0].mxu0
  %v597 = vadd.f32 %v453, %v596
  %v598 = vpop.f32.mrb[0].mxu0
  %599 = vmatprep.mubr.f32.mxu0 0.0
  %600 = vmatmul.mubr.f32.gmra.mrb[0].mxu0 %v363
  %v601 = vpop.f32.mrb[0].mxu0
  %v602 = vadd.f32 %v458, %v601
  %v603 = vpop.f32.mrb[0].mxu0
  %604 = vdwg.mxu0
  %v605 = vtanh.pop %v527
  %v606 = vtanh.pop %v532
  %v607 = vtanh.pop %v537
  %v608 = vtanh.pop %v542
  %v609 = vtanh.pop %v547
  %v610 = vtanh.pop %v552
  %v611 = vtanh.pop %v557
  %v612 = vtanh.pop %v562
  %v613 = vtanh.pop %v567
  %v614 = vtanh.pop %v572
  %v615 = vtanh.pop %v577
  %v616 = vtanh.pop %v582
  %v617 = vtanh.pop %v587
  %v618 = vtanh.pop %v592
  %v619 = vtanh.pop %v597
  %v620 = vtanh.pop %v602
  %v621 = vadd.f32 %v605, %v332
  %v622 = vadd.f32 %v606, %v333
  %v623 = vadd.f32 %v607, %v334
  %v624 = vadd.f32 %v608, %v335
  %v625 = vadd.f32 %v609, %v336
  %v626 = vadd.f32 %v610, %v337
  %v627 = vadd.f32 %v611, %v338
  %v628 = vadd.f32 %v612, %v339
  %v629 = vadd.f32 %v613, %v340
  %v630 = vadd.f32 %v614, %v341
  %v631 = vadd.f32 %v615, %v342
  %v632 = vadd.f32 %v616, %v343
  %v633 = vadd.f32 %v617, %v344
  %v634 = vadd.f32 %v618, %v345
  %v635 = vadd.f32 %v619, %v346
  %v636 = vadd.f32 %v620, %v347
  %v637 = vld [vmem:[%s6] sm:$0xff]
  %v638 = vld [vmem:[%s6 + $0x8] sm:$0xff]
  %v639 = vld [vmem:[%s6 + $0x10] sm:$0xff]
  %v640 = vld [vmem:[%s6 + $0x18] sm:$0xff]
  %v641 = vld [vmem:[%s6 + $0x20] sm:$0xff]
  %v642 = vld [vmem:[%s6 + $0x28] sm:$0xff]
  %v643 = vld [vmem:[%s6 + $0x30] sm:$0xff]
  %v644 = vld [vmem:[%s6 + $0x38] sm:$0xff]
  %v645 = vld [vmem:[%s7] sm:$0xff]
  %v646 = vld [vmem:[%s7 + $0x8] sm:$0xff]
  %v647 = vld [vmem:[%s7 + $0x10] sm:$0xff]
  %v648 = vld [vmem:[%s7 + $0x18] sm:$0xff]
  %v649 = vld [vmem:[%s7 + $0x20] sm:$0xff]
  %v650 = vld [vmem:[%s7 + $0x28] sm:$0xff]
  %v651 = vld [vmem:[%s7 + $0x30] sm:$0xff]
  %v652 = vld [vmem:[%s7 + $0x38] sm:$0xff]
  %654 = vset.pattern.permute.xlu0 0
  %655 = vperm.xlu0 %654, %v645
  %v656 = vpop.permute.xlu0 %655
  %659 = vset.pattern.permute.xlu0 0
  %660 = vperm.xlu0 %659, %v646
  %v661 = vpop.permute.xlu0 %660
  %664 = vset.pattern.permute.xlu0 0
  %665 = vperm.xlu0 %664, %v647
  %v666 = vpop.permute.xlu0 %665
  %669 = vset.pattern.permute.xlu0 0
  %670 = vperm.xlu0 %669, %v648
  %v671 = vpop.permute.xlu0 %670
  %674 = vset.pattern.permute.xlu0 0
  %675 = vperm.xlu0 %674, %v649
  %v676 = vpop.permute.xlu0 %675
  %679 = vset.pattern.permute.xlu0 0
  %680 = vperm.xlu0 %679, %v650
  %v681 = vpop.permute.xlu0 %680
  %684 = vset.pattern.permute.xlu0 0
  %685 = vperm.xlu0 %684, %v651
  %v686 = vpop.permute.xlu0 %685
  %689 = vset.pattern.permute.xlu0 0
  %690 = vperm.xlu0 %689, %v652
  %v691 = vpop.permute.xlu0 %690
  %693 = vmatprep.subr.mxu0 0.0
  %694 = vmatpush1.msra.mxu0 %v621
  %695 = vmatprep.subr.mxu0 0.0
  %696 = vmatpush1.msra.mxu0 %v622
  %697 = vmatprep.subr.mxu0 0.0
  %698 = vmatpush1.msra.mxu0 %v623
  %699 = vmatprep.subr.mxu0 0.0
  %700 = vmatpush1.msra.mxu0 %v624
  %701 = vmatprep.subr.mxu0 0.0
  %702 = vmatpush1.msra.mxu0 %v625
  %703 = vmatprep.subr.mxu0 0.0
  %704 = vmatpush1.msra.mxu0 %v626
  %705 = vmatprep.subr.mxu0 0.0
  %706 = vmatpush1.msra.mxu0 %v627
  %707 = vmatprep.subr.mxu0 0.0
  %708 = vmatpush1.msra.mxu0 %v628
  %709 = vmatprep.subr.mxu0 0.0
  %710 = vmatpush1.msra.mxu0 %v629
  %711 = vmatprep.subr.mxu0 0.0
  %712 = vmatpush1.msra.mxu0 %v630
  %713 = vmatprep.subr.mxu0 0.0
  %714 = vmatpush1.msra.mxu0 %v631
  %715 = vmatprep.subr.mxu0 0.0
  %716 = vmatpush1.msra.mxu0 %v632
  %717 = vmatprep.subr.mxu0 0.0
  %718 = vmatpush1.msra.mxu0 %v633
  %719 = vmatprep.subr.mxu0 0.0
  %720 = vmatpush1.msra.mxu0 %v634
  %721 = vmatprep.subr.mxu0 0.0
  %722 = vmatpush1.msra.mxu0 %v635
  %723 = vmatprep.subr.mxu0 0.0
  %724 = vmatpush1.msra.mxu0 %v636
  %725 = vmatprep.subr.mxu0 0.0
  %726 = vmatpush1.msra.mxu0 0.0
  %727 = vmatprep.subr.mxu0 0.0
  %728 = vmatpush1.msra.mxu0 0.0
  %729 = vmatprep.subr.mxu0 0.0
  %730 = vmatpush1.msra.mxu0 0.0
  %731 = vmatprep.subr.mxu0 0.0
  %732 = vmatpush1.msra.mxu0 0.0
  %733 = vmatprep.subr.mxu0 0.0
  %734 = vmatpush1.msra.mxu0 0.0
  %735 = vmatprep.subr.mxu0 0.0
  %736 = vmatpush1.msra.mxu0 0.0
  %737 = vmatprep.subr.mxu0 0.0
  %738 = vmatpush1.msra.mxu0 0.0
  %739 = vmatprep.subr.mxu0 0.0
  %740 = vmatpush1.msra.mxu0 0.0
  %741 = vmatprep.subr.mxu0 0.0
  %742 = vmatpush1.msra.mxu0 0.0
  %743 = vmatprep.subr.mxu0 0.0
  %744 = vmatpush1.msra.mxu0 0.0
  %745 = vmatprep.subr.mxu0 0.0
  %746 = vmatpush1.msra.mxu0 0.0
  %747 = vmatprep.subr.mxu0 0.0
  %748 = vmatpush1.msra.mxu0 0.0
  %749 = vmatprep.subr.mxu0 0.0
  %750 = vmatpush1.msra.mxu0 0.0
  %751 = vmatprep.subr.mxu0 0.0
  %752 = vmatpush1.msra.mxu0 0.0
  %753 = vmatprep.subr.mxu0 0.0
  %754 = vmatpush1.msra.mxu0 0.0
  %755 = vmatprep.subr.mxu0 0.0
  %756 = vmatpush1.msra.mxu0 0.0
  %757 = vmatprep.mubr.f32.mxu0 0.0
  %758 = vmatmul.mubr.f32.gmra.mrb[0].mxu0 %v637
  %v759 = vpop.f32.mrb[0].mxu0
  %v760 = vadd.f32 %v656, %v759
  %v761 = vpop.f32.mrb[0].mxu0
  %762 = vmatprep.mubr.f32.mxu0 0.0
  %763 = vmatmul.mubr.f32.gmra.mrb[0].mxu0 %v638
  %v764 = vpop.f32.mrb[0].mxu0
  %v765 = vadd.f32 %v661, %v764
  %v766 = vpop.f32.mrb[0].mxu0
  %767 = vmatprep.mubr.f32.mxu0 0.0
  %768 = vmatmul.mubr.f32.gmra.mrb[0].mxu0 %v639
  %v769 = vpop.f32.mrb[0].mxu0
  %v770 = vadd.f32 %v666, %v769
  %v771 = vpop.f32.mrb[0].mxu0
  %772 = vmatprep.mubr.f32.mxu0 0.0
  %773 = vmatmul.mubr.f32.gmra.mrb[0].mxu0 %v640
  %v774 = vpop.f32.mrb[0].mxu0
  %v775 = vadd.f32 %v671, %v774
  %v776 = vpop.f32.mrb[0].mxu0
  %777 = vmatprep.mubr.f32.mxu0 0.0
  %778 = vmatmul.mubr.f32.gmra.mrb[0].mxu0 %v641
  %v779 = vpop.f32.mrb[0].mxu0
  %v780 = vadd.f32 %v676, %v779
  %v781 = vpop.f32.mrb[0].mxu0
  %782 = vmatprep.mubr.f32.mxu0 0.0
  %783 = vmatmul.mubr.f32.gmra.mrb[0].mxu0 %v642
  %v784 = vpop.f32.mrb[0].mxu0
  %v785 = vadd.f32 %v681, %v784
  %v786 = vpop.f32.mrb[0].mxu0
  %787 = vmatprep.mubr.f32.mxu0 0.0
  %788 = vmatmul.mubr.f32.gmra.mrb[0].mxu0 %v643
  %v789 = vpop.f32.mrb[0].mxu0
  %v790 = vadd.f32 %v686, %v789
  %v791 = vpop.f32.mrb[0].mxu0
  %792 = vmatprep.mubr.f32.mxu0 0.0
  %793 = vmatmul.mubr.f32.gmra.mrb[0].mxu0 %v644
  %v794 = vpop.f32.mrb[0].mxu0
  %v795 = vadd.f32 %v691, %v794
  %v796 = vpop.f32.mrb[0].mxu0
  %797 = vdwg.mxu0
  %v798 = vtanh.pop %v760
  %v799 = vtanh.pop %v765
  %v800 = vtanh.pop %v770
  %v801 = vtanh.pop %v775
  %v802 = vtanh.pop %v780
  %v803 = vtanh.pop %v785
  %v804 = vtanh.pop %v790
  %v805 = vtanh.pop %v795
  %v806 = vld [vmem:[%s8] sm:$0xff]
  %v807 = vld [vmem:[%s8 + $0x8] sm:$0xff]
  %v808 = vld [vmem:[%s8 + $0x10] sm:$0xff]
  %v809 = vld [vmem:[%s8 + $0x18] sm:$0xff]
  %v810 = vld [vmem:[%s9] sm:$0xff]
  %v811 = vld [vmem:[%s9 + $0x8] sm:$0xff]
  %v812 = vld [vmem:[%s9 + $0x10] sm:$0xff]
  %v813 = vld [vmem:[%s9 + $0x18] sm:$0xff]
  %815 = vset.pattern.permute.xlu0 0
  %816 = vperm.xlu0 %815, %v810
  %v817 = vpop.permute.xlu0 %816
  %820 = vset.pattern.permute.xlu0 0
  %821 = vperm.xlu0 %820, %v811
  %v822 = vpop.permute.xlu0 %821
  %825 = vset.pattern.permute.xlu0 0
  %826 = vperm.xlu0 %825, %v812
  %v827 = vpop.permute.xlu0 %826
  %830 = vset.pattern.permute.xlu0 0
  %831 = vperm.xlu0 %830, %v813
  %v832 = vpop.permute.xlu0 %831
  %vm834 = vcmask 523264
  %v836 = vsel %vm834, %v806, 0
  %v839 = vsel %vm834, %v807, 0
  %v842 = vsel %vm834, %v808, 0
  %v845 = vsel %vm834, %v809, 0
  %847 = vmatprep.subr.mxu0 0.0
  %848 = vmatpush1.msra.mxu0 %v798
  %849 = vmatprep.subr.mxu0 0.0
  %850 = vmatpush1.msra.mxu0 %v799
  %851 = vmatprep.subr.mxu0 0.0
  %852 = vmatpush1.msra.mxu0 %v800
  %853 = vmatprep.subr.mxu0 0.0
  %854 = vmatpush1.msra.mxu0 %v801
  %855 = vmatprep.subr.mxu0 0.0
  %856 = vmatpush1.msra.mxu0 %v802
  %857 = vmatprep.subr.mxu0 0.0
  %858 = vmatpush1.msra.mxu0 %v803
  %859 = vmatprep.subr.mxu0 0.0
  %860 = vmatpush1.msra.mxu0 %v804
  %861 = vmatprep.subr.mxu0 0.0
  %862 = vmatpush1.msra.mxu0 %v805
  %863 = vmatprep.subr.mxu0 0.0
  %864 = vmatpush1.msra.mxu0 0.0
  %865 = vmatprep.subr.mxu0 0.0
  %866 = vmatpush1.msra.mxu0 0.0
  %867 = vmatprep.subr.mxu0 0.0
  %868 = vmatpush1.msra.mxu0 0.0
  %869 = vmatprep.subr.mxu0 0.0
  %870 = vmatpush1.msra.mxu0 0.0
  %871 = vmatprep.subr.mxu0 0.0
  %872 = vmatpush1.msra.mxu0 0.0
  %873 = vmatprep.subr.mxu0 0.0
  %874 = vmatpush1.msra.mxu0 0.0
  %875 = vmatprep.subr.mxu0 0.0
  %876 = vmatpush1.msra.mxu0 0.0
  %877 = vmatprep.subr.mxu0 0.0
  %878 = vmatpush1.msra.mxu0 0.0
  %879 = vmatprep.subr.mxu0 0.0
  %880 = vmatpush1.msra.mxu0 0.0
  %881 = vmatprep.subr.mxu0 0.0
  %882 = vmatpush1.msra.mxu0 0.0
  %883 = vmatprep.subr.mxu0 0.0
  %884 = vmatpush1.msra.mxu0 0.0
  %885 = vmatprep.subr.mxu0 0.0
  %886 = vmatpush1.msra.mxu0 0.0
  %887 = vmatprep.subr.mxu0 0.0
  %888 = vmatpush1.msra.mxu0 0.0
  %889 = vmatprep.subr.mxu0 0.0
  %890 = vmatpush1.msra.mxu0 0.0
  %891 = vmatprep.subr.mxu0 0.0
  %892 = vmatpush1.msra.mxu0 0.0
  %893 = vmatprep.subr.mxu0 0.0
  %894 = vmatpush1.msra.mxu0 0.0
  %895 = vmatprep.subr.mxu0 0.0
  %896 = vmatpush1.msra.mxu0 0.0
  %897 = vmatprep.subr.mxu0 0.0
  %898 = vmatpush1.msra.mxu0 0.0
  %899 = vmatprep.subr.mxu0 0.0
  %900 = vmatpush1.msra.mxu0 0.0
  %901 = vmatprep.subr.mxu0 0.0
  %902 = vmatpush1.msra.mxu0 0.0
  %903 = vmatprep.subr.mxu0 0.0
  %904 = vmatpush1.msra.mxu0 0.0
  %905 = vmatprep.subr.mxu0 0.0
  %906 = vmatpush1.msra.mxu0 0.0
  %907 = vmatprep.subr.mxu0 0.0
  %908 = vmatpush1.msra.mxu0 0.0
  %909 = vmatprep.subr.mxu0 0.0
  %910 = vmatpush1.msra.mxu0 0.0
  %911 = vmatprep.mubr.f32.mxu0 0.0
  %912 = vmatmul.mubr.f32.gmra.mrb[0].mxu0 %v836
  %v913 = vpop.f32.mrb[0].mxu0
  %v914 = vadd.f32 %v817, %v913
  %v915 = vpop.f32.mrb[0].mxu0
  %916 = vmatprep.mubr.f32.mxu0 0.0
  %917 = vmatmul.mubr.f32.gmra.mrb[0].mxu0 %v839
  %v918 = vpop.f32.mrb[0].mxu0
  %v919 = vadd.f32 %v822, %v918
  %v920 = vpop.f32.mrb[0].mxu0
  %921 = vmatprep.mubr.f32.mxu0 0.0
  %922 = vmatmul.mubr.f32.gmra.mrb[0].mxu0 %v842
  %v923 = vpop.f32.mrb[0].mxu0
  %v924 = vadd.f32 %v827, %v923
  %v925 = vpop.f32.mrb[0].mxu0
  %926 = vmatprep.mubr.f32.mxu0 0.0
  %927 = vmatmul.mubr.f32.gmra.mrb[0].mxu0 %v845
  %v928 = vpop.f32.mrb[0].mxu0
  %v929 = vadd.f32 %v832, %v928
  %v930 = vpop.f32.mrb[0].mxu0
  %931 = vdwg.mxu0
  %v932 = vtanh.pop %v914
  %v933 = vtanh.pop %v919
  %v934 = vtanh.pop %v924
  %v935 = vtanh.pop %v929
  %v936 = vld [vmem:[%s10] sm:$0xff]
  %v937 = vld [vmem:[%s10 + $0x8] sm:$0xff]
  %v938 = vld [vmem:[%s10 + $0x10] sm:$0xff]
  %v939 = vld [vmem:[%s10 + $0x18] sm:$0xff]
  %941 = vset.pattern.permute.xlu0 0
  %942 = vperm.xlu0 %941, %v936
  %v943 = vpop.permute.xlu0 %942
  %946 = vset.pattern.permute.xlu0 0
  %947 = vperm.xlu0 %946, %v937
  %v948 = vpop.permute.xlu0 %947
  %951 = vset.pattern.permute.xlu0 0
  %952 = vperm.xlu0 %951, %v938
  %v953 = vpop.permute.xlu0 %952
  %956 = vset.pattern.permute.xlu0 0
  %957 = vperm.xlu0 %956, %v939
  %v958 = vpop.permute.xlu0 %957
  %v960 = vmul.f32 %v932, %v943
  %v961 = vmul.f32 %v933, %v948
  %v962 = vmul.f32 %v934, %v953
  %v963 = vmul.f32 %v935, %v958
  %v964 = vadd.f32 %v960, %v961
  %v965 = vadd.f32 %v964, %v962
  %v966 = vadd.f32 %v965, %v963
  %v967 = vrot.slane %v966, 4
  %v968 = vadd.f32 %v966, %v967
  %v969 = vrot.slane %v968, 2
  %v970 = vadd.f32 %v968, %v969
  %v971 = vrot.slane %v970, 1
  %v972 = vadd.f32 %v970, %v971
  %v973 = vld [vmem:[#allocation2] sm:$0x1]
  %975 = vset.pattern.permute.xlu0 0
  %976 = vperm.xlu0 %975, %v973
  %v977 = vpop.permute.xlu0 %976
  %v979 = vlaneseq
  %v980 = vshrl.u32 %v979, 7
  %v981 = vsub.s32 0, %v980
  %v982 = vrot.slane %v977, %v981
  %v983 = vadd.f32 %v972, %v982
  %v984 = vxor.u32 %v983, 2147483648
  %v985 = vmul.f32 %v984, 1.442695
  %v986 = vpow.pop %v985
  %v987 = vadd.f32 %v986, 1.0
  %v988 = vrcp.pop %v987
  %v989 = vmul.f32 1.0, %v988
  %990 = vst [vmem:[%s12] sm:$0x1] %v989
  // Predicated region
  $region50: #{prototype_net_forward.1} parent=0 // pred_check
    _
  $region51: #{prototype_net_forward.1} parent=0 // pred_check_branch
    %992 = sbr.rel (0) target = $region53
  $region52: #{prototype_net_forward.1} parent=0 // pred_region
    _
  $region53: #{prototype_net_forward.1} parent=0 // pred_fallthru
    _
  // Predicated region
  $region54: #{prototype_net_forward.1} parent=0 // pred_check
    _
  $region55: #{prototype_net_forward.1} parent=0 // pred_check_branch
    %994 = sbr.rel (0) target = $region57
  $region56: #{prototype_net_forward.1} parent=0 // pred_region
    _
  $region57: #{prototype_net_forward.1} parent=0 // pred_fallthru
    _

</llo_original>
